<compile_context>
chip_gen: v7x
topology: tpu7x:2x2x1
jax: 0.10.0
libtpu: 0.0.40
codegen_flags: <defaults>
</compile_context>

<pallas_src>
import functools

import jax
import jax.numpy as jnp
from jax.experimental import pallas as pl
from jax.experimental.pallas import tpu as pltpu

LANES = 128
SUBLANES = 8
MAX_TILE_ROWS = 4096                    # 4096*128*4B = 2 MiB per f32 input block
VMEM_LIMIT_BYTES = 48 * 1024 * 1024     # room for bigger tiles on any chip


def _dice_partial_kernel(x_ref, t_ref, out_ref, *, tiles_per_split, tile_rows,
                         total_rows, n_full_tiles, needs_mask):
    """Accumulate per-lane partial sums for one (tile_rows, LANES) slab.

    out_ref block (3, 8, LANES) f32, resident across the inner grid axis:
      [0] sum(sigmoid(x) * trunc(t))   (intersection)
      [1] sum(sigmoid(x))
      [2] sum(trunc(t))
    """
    s = pl.program_id(0)                 # split (parallel axis)
    i = pl.program_id(1)                 # tile within split (reduction axis)
    tile_idx = s * tiles_per_split + i   # logical global tile index (exact, no clamp)

    @pl.when(i == 0)
    def _init():
        out_ref[...] = jnp.zeros_like(out_ref)

    groups = tile_rows // SUBLANES

    def _accumulate(x, t):
        sig = jax.nn.sigmoid(x)          # torch.sigmoid(inputs)
        tl = jnp.trunc(t)                # emulate targets.long() (trunc toward zero)

        def fold(a):                     # (tile_rows,128) -> (8,128): VPU-only adds
            return jnp.sum(a.reshape(groups, SUBLANES, LANES), axis=0)

        # Three full-tile-aligned unmasked RMWs into the resident accumulator.
        out_ref[0] += fold(sig * tl)
        out_ref[1] += fold(sig)
        out_ref[2] += fold(tl)

    if not needs_mask:
        # Every grid tile is fully in range: pure mask-free streaming path.
        _accumulate(x_ref[...].astype(jnp.float32),
                    t_ref[...].astype(jnp.float32))
    else:
        @pl.when(tile_idx < n_full_tiles)
        def _fast():
            _accumulate(x_ref[...].astype(jnp.float32),
                        t_ref[...].astype(jnp.float32))

        @pl.when(tile_idx >= n_full_tiles)
        def _tail():
            # Only the trailing tile can contain rows past the end of the data
            # (Pallas fills them with unspecified values); mask on the small
            # row index — no global flat-index math, no int32 overflow risk.
            x = x_ref[...].astype(jnp.float32)
            t = t_ref[...].astype(jnp.float32)
            local_row = jax.lax.broadcasted_iota(jnp.int32, x.shape, 0)
            valid = (tile_idx * tile_rows + local_row) < total_rows
            # sigmoid(-1e30) == 0 exactly and trunc(0) == 0, so masked rows
            # contribute nothing (holds for f32/bf16; f16 saturates to -inf -> 0).
            _accumulate(jnp.where(valid, x, jnp.float32(-1e30)),
                        jnp.where(valid, t, jnp.float32(0.0)))


def dice_loss(inputs, targets, smooth: float = 1.0, *,
              max_tile_rows: int = MAX_TILE_ROWS, num_splits: int = 1):
    """Dice loss = 1 - (2*sum(sig(x)*t_long) + s) / (sum(sig(x)) + sum(t_long) + s).

    num_splits: leave at 1 on single-TensorCore chips (v5e/v6e); set 2 on v7x
    so the leading "parallel" grid axis can be sharded across the 2 TCs.
    """
    n = inputs.size
    assert targets.size == n

    x = inputs.reshape(-1)    # keep native dtype (bf16/f32/...): min HBM traffic
    t = targets.reshape(-1)

    # Pad flat length up to a multiple of 8*128 so the 2-D view always has a
    # row count divisible by 8 (needed for the (groups, 8, 128) fold).
    rows = pl.cdiv(n, LANES)
    rows_p = pl.cdiv(rows, SUBLANES) * SUBLANES
    pad = rows_p * LANES - n
    if pad:
        # Sentinel padding keeps the kernel mask-free for in-array padding:
        # sigmoid(-1e30) == 0 and trunc(0) == 0 -> zero contribution.
        x = jnp.pad(x, (0, pad), constant_values=-1e30)
        t = jnp.pad(t, (0, pad), constant_values=0)
    x = x.reshape(rows_p, LANES)
    t = t.reshape(rows_p, LANES)

    # Tile rows: multiple of 8, capped by VMEM-friendly max.
    max_tile_rows = max(SUBLANES, (max_tile_rows // SUBLANES) * SUBLANES)
    tile_rows = min(max_tile_rows, rows_p)
    tiles_total = pl.cdiv(rows_p, tile_rows)

    # Optional row split across the parallel grid axis (v7x's 2 TCs).  Only
    # taken when it divides the tile count exactly — no duplicate/clamped
    # tail tile, no extra masking.
    splits = num_splits if (num_splits > 1 and tiles_total % num_splits == 0) else 1
    tiles_per_split = tiles_total // splits
    n_full_tiles = rows_p // tile_rows
    needs_mask = tiles_total != n_full_tiles     # only a partial trailing block

    kernel = functools.partial(
        _dice_partial_kernel,
        tiles_per_split=tiles_per_split,
        tile_rows=tile_rows,
        total_rows=rows_p,
        n_full_tiles=n_full_tiles,
        needs_mask=needs_mask,
    )

    in_map = lambda s, i: (s * tiles_per_split + i, 0)
    out_bytes = splits * 3 * SUBLANES * LANES * 4
    cost = pl.CostEstimate(
        flops=int(6 * rows_p * LANES),
        transcendentals=int(rows_p * LANES),
        bytes_accessed=int(x.nbytes + t.nbytes + out_bytes),
    )

    partials = pl.pallas_call(
        kernel,
        out_shape=jax.ShapeDtypeStruct((splits, 3, SUBLANES, LANES), jnp.float32),
        grid_spec=pltpu.PrefetchScalarGridSpec(
            num_scalar_prefetch=0,
            grid=(splits, tiles_per_split),
            in_specs=[
                pl.BlockSpec((tile_rows, LANES), in_map),
                pl.BlockSpec((tile_rows, LANES), in_map),
            ],
            out_specs=pl.BlockSpec((None, 3, SUBLANES, LANES),
                                   lambda s, i: (s, 0, 0, 0)),
        ),
        compiler_params=pltpu.CompilerParams(
            dimension_semantics=("parallel", "arbitrary"),
            vmem_limit_bytes=VMEM_LIMIT_BYTES,
        ),
        cost_estimate=cost,
    )(x, t)

    # Tiny finalize (splits*3*8*128 floats) in the wrapper.
    inter = jnp.sum(partials[:, 0])
    s_sum = jnp.sum(partials[:, 1])
    t_sum = jnp.sum(partials[:, 2])
    dice = (2.0 * inter + smooth) / (s_sum + t_sum + smooth)
    return 1.0 - dice


def _reference_dice_loss(inputs, targets, smooth: float = 1.0):
    s = jax.nn.sigmoid(inputs.reshape(-1).astype(jnp.float32))
    t = jnp.trunc(targets.reshape(-1).astype(jnp.float32))
    inter = jnp.sum(s * t)
    dice = (2.0 * inter + smooth) / (jnp.sum(s) + jnp.sum(t) + smooth)
    return 1.0 - dice


if __name__ == "__main__":
    key = jax.random.PRNGKey(0)
    k1, k2, k3, k4 = jax.random.split(key, 4)

    # Case 1: spec-sized NCHW logits + binary targets (single full-extent tile).
    x1 = jax.random.normal(k1, (2, 4, 16, 16), dtype=jnp.float32)
    t1 = (jax.random.uniform(k2, (2, 4, 16, 16)) > 0.5).astype(jnp.float32)
    out1 = dice_loss(x1, t1, smooth=1.0)
    jax.block_until_ready(out1)
    ref1 = _reference_dice_loss(x1, t1, 1.0)
    assert jnp.allclose(out1, ref1, atol=1e-5, rtol=1e-5), (out1, ref1)

    # Case 2: multi-tile pipeline + exact 2-way split + sentinel lane padding
    # (small max_tile_rows so those paths are hit at a small size), mask-free.
    x2 = jax.random.normal(k3, (2, 3, 24, 24), dtype=jnp.float32)
    t2 = (jax.random.uniform(k4, (2, 3, 24, 24)) > 0.5).astype(jnp.float32)
    out2 = dice_loss(x2, t2, smooth=1.0, max_tile_rows=8, num_splits=2)
    jax.block_until_ready(out2)
    ref2 = _reference_dice_loss(x2, t2, 1.0)
    assert jnp.allclose(out2, ref2, atol=1e-5, rtol=1e-5), (out2, ref2)

    # Case 3: n not a multiple of 128 (sentinel padding) + native bf16 logits.
    x3 = jax.random.normal(k1, (3, 1, 10, 10), dtype=jnp.bfloat16)
    t3 = (jax.random.uniform(k2, (3, 1, 10, 10)) > 0.5).astype(jnp.float32)
    out3 = dice_loss(x3, t3, smooth=1.0)
    jax.block_until_ready(out3)
    ref3 = _reference_dice_loss(x3.astype(jnp.float32), t3, 1.0)
    assert jnp.allclose(out3, ref3, atol=2e-3, rtol=2e-3), (out3, ref3)

    # Case 4: partial trailing block (rows % tile_rows != 0) -> masked tail path,
    # combined with a 2-way split.
    x4 = jax.random.normal(k3, (2, 3, 20, 20), dtype=jnp.float32)
    t4 = (jax.random.uniform(k4, (2, 3, 20, 20)) > 0.5).astype(jnp.float32)
    out4 = dice_loss(x4, t4, smooth=1.0, max_tile_rows=16, num_splits=2)
    jax.block_until_ready(out4)
    ref4 = _reference_dice_loss(x4, t4, 1.0)
    assert jnp.allclose(out4, ref4, atol=1e-5, rtol=1e-5), (out4, ref4)

    print("KERNEL_OK")
</pallas_src>

<mosaic_0001>
module attributes {stable_mosaic.version = 11 : i64} {
  func.func @_dice_partial_kernel(%arg0: i32, %arg1: i32, %arg2: memref<16x128xf32, #tpu.memory_space<vmem>>, %arg3: memref<16x128xf32, #tpu.memory_space<vmem>>, %arg4: memref<1x3x8x128xf32, #tpu.memory_space<vmem>>) attributes {dimension_semantics = [#tpu.dimension_semantics<parallel>, #tpu.dimension_semantics<arbitrary>], iteration_bounds = array<i64: 1, 1>, scalar_prefetch = 0 : i64, scratch_operands = 0 : i64, tpu.core_type = #tpu.core_type<tc>, window_params = [{transform_indices = @transform_0, window_bounds = array<i64: 16, 128>}, {transform_indices = @transform_1, window_bounds = array<i64: 16, 128>}, {transform_indices = @transform_2, window_bounds = array<i64: 1, 3, 8, 128>}]} {
    %c0_i32 = arith.constant 0 : i32
    %0 = arith.cmpi eq, %arg1, %c0_i32 : i32
    %1 = arith.extui %0 : i1 to i32
    %c0_i32_0 = arith.constant 0 : i32
    %2 = arith.cmpi ne, %1, %c0_i32_0 : i32
    scf.if %2 {
      %cst_30 = arith.constant 0.000000e+00 : f32
      %40 = vector.broadcast %cst_30 : f32 to vector<3x8x128xf32>
      %c0_31 = arith.constant 0 : index
      %c0_32 = arith.constant 0 : index
      %c0_33 = arith.constant 0 : index
      %c0_34 = arith.constant 0 : index
      %41 = vector.load %arg4[%c0_31, %c0_32, %c0_33, %c0_34] : memref<1x3x8x128xf32, #tpu.memory_space<vmem>>, vector<1x3x8x128xf32>
      %42 = vector.shape_cast %41 : vector<1x3x8x128xf32> to vector<3x8x128xf32>
      %43 = vector.shape_cast %40 : vector<3x8x128xf32> to vector<1x3x8x128xf32>
      tpu.vector_store %arg4[%c0_31, %c0_32, %c0_33, %c0_34], %43 {strides = array<i32>} : memref<1x3x8x128xf32, #tpu.memory_space<vmem>>, vector<1x3x8x128xf32>,
    } else {
    }
    %c0 = arith.constant 0 : index
    %c0_1 = arith.constant 0 : index
    %3 = vector.load %arg2[%c0, %c0_1] : memref<16x128xf32, #tpu.memory_space<vmem>>, vector<16x128xf32>
    %c0_2 = arith.constant 0 : index
    %c0_3 = arith.constant 0 : index
    %4 = vector.load %arg3[%c0_2, %c0_3] : memref<16x128xf32, #tpu.memory_space<vmem>>, vector<16x128xf32>
    %5 = arith.negf %3 : vector<16x128xf32>
    %6 = math.exp %5 : vector<16x128xf32>
    %cst = arith.constant 1.000000e+00 : f32
    %7 = vector.broadcast %cst : f32 to vector<16x128xf32>
    %8 = arith.addf %7, %6 : vector<16x128xf32>
    %9 = arith.divf %7, %8 : vector<16x128xf32>
    %cst_4 = arith.constant 0.000000e+00 : f32
    %10 = vector.broadcast %cst_4 : f32 to vector<16x128xf32>
    %11 = arith.cmpf olt, %4, %10 : vector<16x128xf32>
    %12 = math.ceil %4 : vector<16x128xf32>
    %13 = math.floor %4 : vector<16x128xf32>
    %14 = arith.select %11, %12, %13 : vector<16x128xi1>, vector<16x128xf32>
    %c0_5 = arith.constant 0 : index
    %c0_6 = arith.constant 0 : index
    %c0_7 = arith.constant 0 : index
    %c0_8 = arith.constant 0 : index
    %15 = vector.load %arg4[%c0_5, %c0_6, %c0_7, %c0_8] : memref<1x3x8x128xf32, #tpu.memory_space<vmem>>, vector<1x1x8x128xf32>
    %16 = vector.shape_cast %15 : vector<1x1x8x128xf32> to vector<8x128xf32>
    %17 = arith.mulf %9, %14 : vector<16x128xf32>
    %18 = vector.shape_cast %17 : vector<16x128xf32> to vector<2x8x128xf32>
    %cst_9 = arith.constant dense<0.000000e+00> : vector<8x128xf32>
    %19 = vector.multi_reduction <add>, %18, %cst_9 [0] : vector<2x8x128xf32> to vector<8x128xf32>
    %20 = arith.addf %16, %19 : vector<8x128xf32>
    %c0_10 = arith.constant 0 : index
    %c0_11 = arith.constant 0 : index
    %c0_12 = arith.constant 0 : index
    %c0_13 = arith.constant 0 : index
    %21 = vector.load %arg4[%c0_10, %c0_11, %c0_12, %c0_13] : memref<1x3x8x128xf32, #tpu.memory_space<vmem>>, vector<1x1x8x128xf32>
    %22 = vector.shape_cast %21 : vector<1x1x8x128xf32> to vector<8x128xf32>
    %23 = vector.shape_cast %20 : vector<8x128xf32> to vector<1x1x8x128xf32>
    tpu.vector_store %arg4[%c0_10, %c0_11, %c0_12, %c0_13], %23 {strides = array<i32>} : memref<1x3x8x128xf32, #tpu.memory_space<vmem>>, vector<1x1x8x128xf32>,
    %c0_14 = arith.constant 0 : index
    %c1 = arith.constant 1 : index
    %c0_15 = arith.constant 0 : index
    %c0_16 = arith.constant 0 : index
    %24 = vector.load %arg4[%c0_14, %c1, %c0_15, %c0_16] : memref<1x3x8x128xf32, #tpu.memory_space<vmem>>, vector<1x1x8x128xf32>
    %25 = vector.shape_cast %24 : vector<1x1x8x128xf32> to vector<8x128xf32>
    %26 = vector.shape_cast %9 : vector<16x128xf32> to vector<2x8x128xf32>
    %cst_17 = arith.constant dense<0.000000e+00> : vector<8x128xf32>
    %27 = vector.multi_reduction <add>, %26, %cst_17 [0] : vector<2x8x128xf32> to vector<8x128xf32>
    %28 = arith.addf %25, %27 : vector<8x128xf32>
    %c0_18 = arith.constant 0 : index
    %c1_19 = arith.constant 1 : index
    %c0_20 = arith.constant 0 : index
    %c0_21 = arith.constant 0 : index
    %29 = vector.load %arg4[%c0_18, %c1_19, %c0_20, %c0_21] : memref<1x3x8x128xf32, #tpu.memory_space<vmem>>, vector<1x1x8x128xf32>
    %30 = vector.shape_cast %29 : vector<1x1x8x128xf32> to vector<8x128xf32>
    %31 = vector.shape_cast %28 : vector<8x128xf32> to vector<1x1x8x128xf32>
    tpu.vector_store %arg4[%c0_18, %c1_19, %c0_20, %c0_21], %31 {strides = array<i32>} : memref<1x3x8x128xf32, #tpu.memory_space<vmem>>, vector<1x1x8x128xf32>,
    %c0_22 = arith.constant 0 : index
    %c2 = arith.constant 2 : index
    %c0_23 = arith.constant 0 : index
    %c0_24 = arith.constant 0 : index
    %32 = vector.load %arg4[%c0_22, %c2, %c0_23, %c0_24] : memref<1x3x8x128xf32, #tpu.memory_space<vmem>>, vector<1x1x8x128xf32>
    %33 = vector.shape_cast %32 : vector<1x1x8x128xf32> to vector<8x128xf32>
    %34 = vector.shape_cast %14 : vector<16x128xf32> to vector<2x8x128xf32>
    %cst_25 = arith.constant dense<0.000000e+00> : vector<8x128xf32>
    %35 = vector.multi_reduction <add>, %34, %cst_25 [0] : vector<2x8x128xf32> to vector<8x128xf32>
    %36 = arith.addf %33, %35 : vector<8x128xf32>
    %c0_26 = arith.constant 0 : index
    %c2_27 = arith.constant 2 : index
    %c0_28 = arith.constant 0 : index
    %c0_29 = arith.constant 0 : index
    %37 = vector.load %arg4[%c0_26, %c2_27, %c0_28, %c0_29] : memref<1x3x8x128xf32, #tpu.memory_space<vmem>>, vector<1x1x8x128xf32>
    %38 = vector.shape_cast %37 : vector<1x1x8x128xf32> to vector<8x128xf32>
    %39 = vector.shape_cast %36 : vector<8x128xf32> to vector<1x1x8x128xf32>
    tpu.vector_store %arg4[%c0_26, %c2_27, %c0_28, %c0_29], %39 {strides = array<i32>} : memref<1x3x8x128xf32, #tpu.memory_space<vmem>>, vector<1x1x8x128xf32>,
    return
  }
  func.func @transform_0(%arg0: i32, %arg1: i32) -> (i32, i32) {
    %c1_i32 = arith.constant 1 : i32
    %0 = arith.muli %arg0, %c1_i32 : i32
    %1 = arith.addi %0, %arg1 : i32
    %c0_i32 = arith.constant 0 : i32
    %c0_i32_0 = arith.constant 0 : i32
    return %1, %c0_i32 : i32, i32
  }
  func.func @transform_1(%arg0: i32, %arg1: i32) -> (i32, i32) {
    %c1_i32 = arith.constant 1 : i32
    %0 = arith.muli %arg0, %c1_i32 : i32
    %1 = arith.addi %0, %arg1 : i32
    %c0_i32 = arith.constant 0 : i32
    %c0_i32_0 = arith.constant 0 : i32
    return %1, %c0_i32 : i32, i32
  }
  func.func @transform_2(%arg0: i32, %arg1: i32) -> (i32, i32, i32, i32) {
    %c0_i32 = arith.constant 0 : i32
    %c0_i32_0 = arith.constant 0 : i32
    %c0_i32_1 = arith.constant 0 : i32
    %c0_i32_2 = arith.constant 0 : i32
    return %arg0, %c0_i32, %c0_i32_0, %c0_i32_1 : i32, i32, i32, i32
  }
}

</mosaic_0001>

<llo_original>
// kernel: tpu_custom_call.1
$region0: #{tpu_custom_call.1}
  #allocation0 [shape = 'u32[]', space=smem, size = 0x4, offset = 0x4, fixed_abs, tag = 'smem constant byte address 0x4 - core index']
  #allocation1 [shape = 'u32[144,128]{1,0:T(1,128)}', space=vmem, size = 0x12000, scoped, tag = 'internal scratch']
  %s0 = inlined_call_operand.hbm [shape: f32[16,128], index: 0, kind: input, shape index: {}]
  %s1 = inlined_call_operand.hbm [shape: f32[16,128], index: 1, kind: input, shape index: {}]
  %s2 = inlined_call_operand.hbm [shape: f32[1,3,8,128], index: 2, kind: output, shape index: {}]
  %s3 = sld [smem:[#allocation0]]
  $region30: #{tpu_custom_call.1} parent=0
    _
  %s5 = ssub.s32 1, %s3
  %s6 = scalar_select 0, %s5, %s3
  $region1: #{tpu_custom_call.1} parent=0
    #allocation2 [shape = 'u8[8192]{0}', space=vmem, size = 0x2000, scoped, tag = 'input window, operand 0, single buffered']
    #allocation3 [shape = 's32[1]{0}', space=sflag, size = 0x4, scoped, tag = 'scoped memory for tpu_custom_call.1']
    #allocation4 [shape = 's32[1]{0}', space=sflag, size = 0x4, scoped, tag = 'scoped memory for tpu_custom_call.1']
    #allocation5 [shape = 'u8[8192]{0}', space=vmem, size = 0x2000, scoped, tag = 'input window, operand 1, single buffered']
    #allocation6 [shape = 's32[1]{0}', space=sflag, size = 0x4, scoped, tag = 'scoped memory for tpu_custom_call.1']
    #allocation7 [shape = 'u8[12288]{0}', space=vmem, size = 0x3000, scoped, tag = 'output window, operand 0, single buffered']
    %7 = vsyncpa [#allocation3], 0
    %8 = vsyncpa [#allocation6], 0
    %9 = vsyncpa [#allocation4], 0
    // Predicated region
    $region2: #{tpu_custom_call.1} parent=1 // pred_check
      _
    $region3: #{tpu_custom_call.1} parent=1 // pred_check_branch
      %11 = sbr.rel (0) target = $region5
    $region4: #{tpu_custom_call.1} parent=1 // pred_region
      %s12 = sadd.s32 0, 0
      %s13 = smul.u32 2, %s12
      %s15 = ssub.s32 256, 256
      %16 = vsyncadd [#allocation3], %s15
      %s17 = smul.addr %s13, 128
      %s18 = scalar_lea.hbm %s0, %s17
      %s19 = sshll.u32 [#allocation2], 4
      %s20 = int_to_ptr.vmem [resolvable:$true] %s19
      %25 = dma.hbm_to_vmem [thread:$0]  %s18, 256, %s20, [#allocation3], 128, 128, 8
    $region5: #{tpu_custom_call.1} parent=1 // pred_fallthru
      _
    // Predicated region
    $region6: #{tpu_custom_call.1} parent=1 // pred_check
      _
    $region7: #{tpu_custom_call.1} parent=1 // pred_check_branch
      %27 = sbr.rel (0) target = $region9
    $region8: #{tpu_custom_call.1} parent=1 // pred_region
      %s28 = sadd.s32 0, 0
      %s29 = smul.u32 2, %s28
      %s31 = ssub.s32 256, 256
      %32 = vsyncadd [#allocation6], %s31
      %s33 = smul.addr %s29, 128
      %s34 = scalar_lea.hbm %s1, %s33
      %s35 = sshll.u32 [#allocation5], 4
      %s36 = int_to_ptr.vmem [resolvable:$true] %s35
      %41 = dma.hbm_to_vmem [thread:$0]  %s34, 256, %s36, [#allocation6], 128, 128, 8
    $region9: #{tpu_custom_call.1} parent=1 // pred_fallthru
      _
    // Predicated region
    $region10: #{tpu_custom_call.1} parent=1 // pred_check
      _
    $region11: #{tpu_custom_call.1} parent=1 // pred_check_branch
      %43 = sbr.rel (0) target = $region13
    $region12: #{tpu_custom_call.1} parent=1 // pred_region
      %44 = dma.done [#allocation3], 256
    $region13: #{tpu_custom_call.1} parent=1 // pred_fallthru
      _
    // Predicated region
    $region14: #{tpu_custom_call.1} parent=1 // pred_check
      _
    $region15: #{tpu_custom_call.1} parent=1 // pred_check_branch
      %46 = sbr.rel (0) target = $region17
    $region16: #{tpu_custom_call.1} parent=1 // pred_region
      %47 = dma.done [#allocation6], 256
    $region17: #{tpu_custom_call.1} parent=1 // pred_fallthru
      _
    %s48 = sadd.s32 0, 0
    %s49 = smul.u32 2, %s48
    %s50 = sadd.s32 0, 0
    %s51 = smul.u32 2, %s50
    %p52 = scmp.eq.s32.totalorder 0, 0
    // Predicated region
    $region18: #{tpu_custom_call.1} parent=1 // pred_check
      %p53 = pneg %p52
    $region19: #{tpu_custom_call.1} parent=1 // pred_check_branch
      %55 = sbr.rel (%p53) target = $region21
    $region20: #{tpu_custom_call.1} parent=1 // pred_region
      %56 = vst [vmem:[#allocation7] sm:$0xff] 0.0
      %57 = vst [vmem:[#allocation7 + $0x8] sm:$0xff] 0.0
      %58 = vst [vmem:[#allocation7 + $0x10] sm:$0xff] 0.0
    $region21: #{tpu_custom_call.1} parent=1 // pred_fallthru
      _
    %v59 = vld [vmem:[#allocation2] sm:$0xff]
    %v60 = vld [vmem:[#allocation2 + $0x8] sm:$0xff]
    %v61 = vld [vmem:[#allocation5] sm:$0xff]
    %v62 = vld [vmem:[#allocation5 + $0x8] sm:$0xff]
    %v63 = vxor.u32 %v59, 2147483648
    %v64 = vxor.u32 %v60, 2147483648
    %v65 = vmul.f32 %v63, 1.442695
    %v66 = vpow.pop %v65
    %v67 = vmul.f32 %v64, 1.442695
    %v68 = vpow.pop %v67
    %v69 = vadd.f32 %v66, 1.0
    %v70 = vadd.f32 %v68, 1.0
    %v71 = vrcp.pop %v69
    %v72 = vmul.f32 1.0, %v71
    %v73 = vrcp.pop %v70
    %v74 = vmul.f32 1.0, %v73
    %vm75 = vcmp.lt.f32.partialorder %v61, 0.0
    %vm76 = vcmp.lt.f32.partialorder %v62, 0.0
    %v77 = vceil.f32 %v61
    %v78 = vceil.f32 %v62
    %v79 = vfloor.f32 %v61
    %v80 = vfloor.f32 %v62
    %v81 = vsel %vm75, %v77, %v79
    %v82 = vsel %vm76, %v78, %v80
    %v83 = vld [vmem:[#allocation7] sm:$0xff]
    %v84 = vmul.f32 %v72, %v81
    %v85 = vmul.f32 %v74, %v82
    %v86 = vadd.f32 %v84, %v85
    %v87 = vadd.f32 %v83, %v86
    %88 = vst [vmem:[#allocation7] sm:$0xff] %v87
    %s89 = scalar_lea.vmem [#allocation7], 8
    %v90 = vld [vmem:[%s89] sm:$0xff]
    %v91 = vadd.f32 %v72, %v74
    %v92 = vadd.f32 %v90, %v91
    %93 = vst [vmem:[%s89] sm:$0xff] %v92
    %s94 = scalar_lea.vmem [#allocation7], 16
    %v95 = vld [vmem:[%s94] sm:$0xff]
    %v96 = vadd.f32 %v81, %v82
    %v97 = vadd.f32 %v95, %v96
    %98 = vst [vmem:[%s94] sm:$0xff] %v97
    // Predicated region
    $region22: #{tpu_custom_call.1} parent=1 // pred_check
      _
    $region23: #{tpu_custom_call.1} parent=1 // pred_check_branch
      %100 = sbr.rel (0) target = $region25
    $region24: #{tpu_custom_call.1} parent=1 // pred_region
      %s102 = ssub.s32 384, 384
      %103 = vsyncadd [#allocation4], %s102
      %s104 = sshll.u32 [#allocation7], 4
      %s105 = int_to_ptr.vmem [resolvable:$true] %s104
      %110 = dma.vmem_to_hbm [thread:$0]  %s105, 384, %s2, [#allocation4], 128, 128, 8
    $region25: #{tpu_custom_call.1} parent=1 // pred_fallthru
      _
    // Predicated region
    $region26: #{tpu_custom_call.1} parent=1 // pred_check
      _
    $region27: #{tpu_custom_call.1} parent=1 // pred_check_branch
      %112 = sbr.rel (0) target = $region29
    $region28: #{tpu_custom_call.1} parent=1 // pred_region
      %113 = dma.done [#allocation4], 384
    $region29: #{tpu_custom_call.1} parent=1 // pred_fallthru
      _
    %114 = vsyncpa [#allocation3], 1
    %115 = vsyncpa [#allocation6], 1
    %116 = vsyncpa [#allocation4], 1

</llo_original>
